<compile_context>
chip_gen: v7x
topology: tpu7x:2x2x1
jax: 0.10.0
libtpu: 0.0.40
codegen_flags: <defaults>
</compile_context>

<pallas_src>
import functools

import jax
import jax.numpy as jnp
from jax.experimental import pallas as pl
from jax.experimental.pallas import tpu as pltpu


def _rope_kernel(pos_ref, inv_ref, cos_ref, sin_ref, *, attention_scaling):
    # pos_ref: (TM, 1) float32 column of positions (sublane-major).
    # inv_ref: (1, head_dim) float32, inv_freq already duplicated to full width.
    # cos_ref / sin_ref: (TM, head_dim) output dtype.
    angles = pos_ref[...] * inv_ref[...]        # (TM, head_dim) f32 VPU broadcast-mul
    c = jnp.cos(angles)                         # EUP
    s = jnp.sin(angles)
    if attention_scaling != 1.0:                # static check: no VALU filler when == 1.0
        c = c * attention_scaling
        s = s * attention_scaling
    cos_ref[...] = c.astype(cos_ref.dtype)      # single lane-dense store each
    sin_ref[...] = s.astype(sin_ref.dtype)


def _round_up(a, b):
    return ((a + b - 1) // b) * b


def qwen3_rotary_embedding(x, position_ids, *, head_dim, rope_theta=10000.0,
                           attention_scaling=1.0, tile_rows=4096, out_dtype=None):
    """Returns (cos, sin), each of shape (bs, seq, head_dim).

    out_dtype defaults to x.dtype (matches the PyTorch module); pass
    jnp.bfloat16 explicitly to halve output HBM traffic.
    """
    bs, seq = position_ids.shape
    n_rows = bs * seq
    out_dtype = x.dtype if out_dtype is None else out_dtype

    # Deterministic "parameter" init, identical to default_rope_init, then
    # pre-duplicated to full head_dim so the kernel is fully lane-dense.
    inv_freq_half = 1.0 / (rope_theta ** (jnp.arange(0, head_dim, 2, dtype=jnp.float32)
                                          / head_dim))
    inv_freq_full = jnp.concatenate([inv_freq_half, inv_freq_half],
                                    axis=-1).reshape(1, head_dim)

    # Row tile: multiple of 8 sublanes, large to amortize per-step grid
    # overhead, but capped at ~half the rows so n_tiles >= 2 (v7x megacore).
    tm = min(int(tile_rows), _round_up(pl.cdiv(n_rows, 2), 8))
    tm = max(tm, 8)
    n_tiles = pl.cdiv(n_rows, tm)

    # Positions as a (rows, 1) f32 column: outer product with inv_freq is a
    # plain VPU broadcast-multiply (no in-kernel lane<->sublane relayout).
    pos_col = position_ids.reshape(n_rows, 1).astype(jnp.float32)

    kernel = functools.partial(_rope_kernel,
                               attention_scaling=float(attention_scaling))

    out_bytes = jnp.dtype(out_dtype).itemsize
    cost = pl.CostEstimate(
        flops=2 * n_rows * head_dim,                 # broadcast-mul + (optional) scale
        transcendentals=2 * n_rows * head_dim,       # cos + sin
        bytes_accessed=n_rows * 4 + head_dim * 4
                       + 2 * n_rows * head_dim * out_bytes,
    )

    cos, sin = pl.pallas_call(
        kernel,
        out_shape=(
            jax.ShapeDtypeStruct((n_rows, head_dim), out_dtype),
            jax.ShapeDtypeStruct((n_rows, head_dim), out_dtype),
        ),
        grid_spec=pltpu.PrefetchScalarGridSpec(
            num_scalar_prefetch=0,
            grid=(n_tiles,),
            in_specs=[
                pl.BlockSpec((tm, 1), lambda i: (i, 0)),          # positions column tile
                pl.BlockSpec((1, head_dim), lambda i: (0, 0)),    # full-width inv_freq
            ],
            out_specs=[
                pl.BlockSpec((tm, head_dim), lambda i: (i, 0)),
                pl.BlockSpec((tm, head_dim), lambda i: (i, 0)),
            ],
        ),
        compiler_params=pltpu.CompilerParams(
            dimension_semantics=("parallel",),
            vmem_limit_bytes=48 << 20,   # headroom for big tiles; < 64 MiB v7x physical
        ),
        cost_estimate=cost,
    )(pos_col, inv_freq_full)

    # Metadata-only reshape (no slice, no extra HBM round trip).
    cos = cos.reshape(bs, seq, head_dim)
    sin = sin.reshape(bs, seq, head_dim)
    return cos, sin


def _reference(x, position_ids, head_dim, rope_theta=10000.0, attention_scaling=1.0):
    inv_freq = 1.0 / (rope_theta ** (jnp.arange(0, head_dim, 2, dtype=jnp.float32)
                                     / head_dim))
    freqs = position_ids.astype(jnp.float32)[:, :, None] * inv_freq[None, None, :]
    emb = jnp.concatenate([freqs, freqs], axis=-1)
    cos = (jnp.cos(emb) * attention_scaling).astype(x.dtype)
    sin = (jnp.sin(emb) * attention_scaling).astype(x.dtype)
    return cos, sin


if __name__ == "__main__":
    # Small config consistent with the module: hidden_size=32, heads=4 -> head_dim=8
    bs, seq, hidden_size, num_heads = 2, 8, 32, 4
    head_dim = hidden_size // num_heads
    rope_theta = 10000.0

    key = jax.random.PRNGKey(0)
    kx, kp = jax.random.split(key)
    x = jax.random.normal(kx, (bs, seq, hidden_size), dtype=jnp.float32)
    position_ids = jnp.broadcast_to(jnp.arange(seq, dtype=jnp.int32)[None, :], (bs, seq))

    cos, sin = qwen3_rotary_embedding(x, position_ids, head_dim=head_dim,
                                      rope_theta=rope_theta, attention_scaling=1.0)
    cos = jax.block_until_ready(cos)
    sin = jax.block_until_ready(sin)

    cos_ref, sin_ref = _reference(x, position_ids, head_dim, rope_theta, 1.0)
    assert cos.shape == (bs, seq, head_dim) and sin.shape == (bs, seq, head_dim)
    assert cos.dtype == x.dtype and sin.dtype == x.dtype
    assert jnp.allclose(cos, cos_ref, atol=1e-5, rtol=1e-5)
    assert jnp.allclose(sin, sin_ref, atol=1e-5, rtol=1e-5)

    print("KERNEL_OK")
</pallas_src>

<mosaic_0001>
module attributes {stable_mosaic.version = 11 : i64} {
  func.func @_rope_kernel(%arg0: i32, %arg1: memref<8x1xf32, #tpu.memory_space<vmem>>, %arg2: memref<1x8xf32, #tpu.memory_space<vmem>>, %arg3: memref<8x8xf32, #tpu.memory_space<vmem>>, %arg4: memref<8x8xf32, #tpu.memory_space<vmem>>) attributes {dimension_semantics = [#tpu.dimension_semantics<parallel>], iteration_bounds = array<i64: 2>, scalar_prefetch = 0 : i64, scratch_operands = 0 : i64, tpu.core_type = #tpu.core_type<tc>, window_params = [{transform_indices = @transform_0, window_bounds = array<i64: 8, 1>}, {pipeline_mode = #tpu.pipeline_mode<synchronous>, transform_indices = @transform_1, window_bounds = array<i64: 1, 8>}, {transform_indices = @transform_2, window_bounds = array<i64: 8, 8>}, {transform_indices = @transform_3, window_bounds = array<i64: 8, 8>}]} {
    %c0 = arith.constant 0 : index
    %c0_0 = arith.constant 0 : index
    %0 = vector.load %arg1[%c0, %c0_0] : memref<8x1xf32, #tpu.memory_space<vmem>>, vector<8x1xf32>
    %c0_1 = arith.constant 0 : index
    %c0_2 = arith.constant 0 : index
    %1 = vector.load %arg2[%c0_1, %c0_2] : memref<1x8xf32, #tpu.memory_space<vmem>>, vector<1x8xf32>
    %2 = vector.broadcast %0 : vector<8x1xf32> to vector<8x8xf32>
    %3 = vector.broadcast %1 : vector<1x8xf32> to vector<8x8xf32>
    %4 = arith.mulf %2, %3 : vector<8x8xf32>
    %5 = math.cos %4 : vector<8x8xf32>
    %6 = math.sin %4 : vector<8x8xf32>
    %c0_3 = arith.constant 0 : index
    %c0_4 = arith.constant 0 : index
    %7 = vector.load %arg3[%c0_3, %c0_4] : memref<8x8xf32, #tpu.memory_space<vmem>>, vector<8x8xf32>
    tpu.vector_store %arg3[%c0_3, %c0_4], %5 {strides = array<i32>} : memref<8x8xf32, #tpu.memory_space<vmem>>, vector<8x8xf32>,
    %c0_5 = arith.constant 0 : index
    %c0_6 = arith.constant 0 : index
    %8 = vector.load %arg4[%c0_5, %c0_6] : memref<8x8xf32, #tpu.memory_space<vmem>>, vector<8x8xf32>
    tpu.vector_store %arg4[%c0_5, %c0_6], %6 {strides = array<i32>} : memref<8x8xf32, #tpu.memory_space<vmem>>, vector<8x8xf32>,
    return
  }
  func.func @transform_0(%arg0: i32) -> (i32, i32) {
    %c0_i32 = arith.constant 0 : i32
    %c0_i32_0 = arith.constant 0 : i32
    return %arg0, %c0_i32 : i32, i32
  }
  func.func @transform_1(%arg0: i32) -> (i32, i32) {
    %c0_i32 = arith.constant 0 : i32
    %c0_i32_0 = arith.constant 0 : i32
    %c0_i32_1 = arith.constant 0 : i32
    return %c0_i32, %c0_i32_0 : i32, i32
  }
  func.func @transform_2(%arg0: i32) -> (i32, i32) {
    %c0_i32 = arith.constant 0 : i32
    %c0_i32_0 = arith.constant 0 : i32
    return %arg0, %c0_i32 : i32, i32
  }
  func.func @transform_3(%arg0: i32) -> (i32, i32) {
    %c0_i32 = arith.constant 0 : i32
    %c0_i32_0 = arith.constant 0 : i32
    return %arg0, %c0_i32 : i32, i32
  }
}

</mosaic_0001>

<llo_original>
// kernel: tpu_custom_call.1
$region0: #{tpu_custom_call.1}
  #allocation0 [shape = 'u32[]', space=smem, size = 0x4, offset = 0x4, fixed_abs, tag = 'smem constant byte address 0x4 - core index']
  #allocation1 [shape = 'u32[144,128]{1,0:T(1,128)}', space=vmem, size = 0x12000, scoped, tag = 'internal scratch']
  %s0 = inlined_call_operand.vmem [shape: f32[16,1], index: 0, kind: input, shape index: {}]
  %s1 = inlined_call_operand.vmem [shape: f32[1,8], index: 1, kind: input, shape index: {}]
  %s2 = inlined_call_operand.vmem [shape: f32[16,8], index: 2, kind: output, shape index: {0}]
  %s3 = inlined_call_operand.vmem [shape: f32[16,8], index: 3, kind: output, shape index: {1}]
  %4 = xla_tuple %s2, %s3
  %s5 = sld [smem:[#allocation0]]
  $region49: #{tpu_custom_call.1} parent=0
    _
  %s7 = ssub.s32 1, %s5
  %s8 = scalar_select 0, %s7, %s5
  loop: start=0, step=1, limit=4
  $region2: #{tpu_custom_call.1} parent=0 // loop_pre_header
    _
  $region3: #{tpu_custom_call.1} parent=0 // loop_header
    %s10 = sphi 0, %s14
    %p11 = scmp.ge.s32.totalorder %s10, 4
    %s20 = sphi 0, %s22
    %s23 = sphi 0, %s20
    %s24 = sphi 0, %s23
    %s40 = sphi 0, %s24
    %s44 = sphi 0, %s44
    %s46 = sphi 0, %s44
    %s47 = sphi 0, %s46
    %s61 = sphi 0, %s47
    %s67 = sphi 0, %s69
    %s70 = sphi 0, %s67
    %s71 = sphi 0, %s70
    %s87 = sphi 0, %s71
    %s93 = sphi 0, %s95
    %s96 = sphi 0, %s93
    %s97 = sphi 0, %s96
    %s113 = sphi 0, %s97
  $region4: #{tpu_custom_call.1} parent=0 // loop_header_branch
    %13 = sbr.rel (%p11) target = $region8
  $region5: #{tpu_custom_call.1} parent=0 // loop_body
    %s15 = ssub.s32 %s10, 1
    %s16 = ssub.s32 %s10, 2
    %s17 = sadd.s32 %s10, 1
    %s18 = ssub.s32 %s10, %s17
    %p19 = scmp.eq.s32.totalorder %s18, 0
    %s21 = sadd.s32 %s20, 1
    %s22 = scalar_select %p19, %s20, %s21
    %p25 = pneg %p19
    %p26 = scmp.eq.s32.totalorder %s10, 1
    %p27 = por %p25, %p26
    %p28 = scmp.ne.s32.totalorder %s20, %s23
    %p29 = scmp.eq.s32.totalorder %s10, 0
    %p30 = por %p28, %p29
    %p31 = scmp.ne.s32.totalorder %s20, %s23
    %p32 = scmp.eq.s32.totalorder %s15, 1
    %p33 = por %p31, %p32
    %p34 = scmp.ne.s32.totalorder %s23, %s24
    %p35 = scmp.eq.s32.totalorder %s15, 0
    %p36 = por %p34, %p35
    %p37 = scmp.ne.s32.totalorder %s23, %s24
    %p38 = scmp.eq.s32.totalorder %s16, 1
    %p39 = por %p37, %p38
    %p41 = scmp.ne.s32.totalorder %s24, %s40
    %p42 = scmp.eq.s32.totalorder %s16, 0
    %p43 = por %p41, %p42
    %s45 = sadd.s32 %s44, 1
    %p48 = scmp.eq.s32.totalorder %s10, 1
    %p49 = scmp.ne.s32.totalorder %s44, %s46
    %p50 = scmp.eq.s32.totalorder %s10, 0
    %p51 = por %p49, %p50
    %p52 = scmp.ne.s32.totalorder %s44, %s46
    %p53 = scmp.eq.s32.totalorder %s15, 1
    %p54 = por %p52, %p53
    %p55 = scmp.ne.s32.totalorder %s46, %s47
    %p56 = scmp.eq.s32.totalorder %s15, 0
    %p57 = por %p55, %p56
    %p58 = scmp.ne.s32.totalorder %s46, %s47
    %p59 = scmp.eq.s32.totalorder %s16, 1
    %p60 = por %p58, %p59
    %p62 = scmp.ne.s32.totalorder %s47, %s61
    %p63 = scmp.eq.s32.totalorder %s16, 0
    %p64 = por %p62, %p63
    %s65 = ssub.s32 %s10, %s17
    %p66 = scmp.eq.s32.totalorder %s65, 0
    %s68 = sadd.s32 %s67, 1
    %s69 = scalar_select %p66, %s67, %s68
    %p72 = pneg %p66
    %p73 = scmp.eq.s32.totalorder %s10, 1
    %p74 = por %p72, %p73
    %p75 = scmp.ne.s32.totalorder %s67, %s70
    %p76 = scmp.eq.s32.totalorder %s10, 0
    %p77 = por %p75, %p76
    %p78 = scmp.ne.s32.totalorder %s67, %s70
    %p79 = scmp.eq.s32.totalorder %s15, 1
    %p80 = por %p78, %p79
    %p81 = scmp.ne.s32.totalorder %s70, %s71
    %p82 = scmp.eq.s32.totalorder %s15, 0
    %p83 = por %p81, %p82
    %p84 = scmp.ne.s32.totalorder %s70, %s71
    %p85 = scmp.eq.s32.totalorder %s16, 1
    %p86 = por %p84, %p85
    %p88 = scmp.ne.s32.totalorder %s71, %s87
    %p89 = scmp.eq.s32.totalorder %s16, 0
    %p90 = por %p88, %p89
    %s91 = ssub.s32 %s10, %s17
    %p92 = scmp.eq.s32.totalorder %s91, 0
    %s94 = sadd.s32 %s93, 1
    %s95 = scalar_select %p92, %s93, %s94
    %p98 = pneg %p92
    %p99 = scmp.eq.s32.totalorder %s10, 1
    %p100 = por %p98, %p99
    %p101 = scmp.ne.s32.totalorder %s93, %s96
    %p102 = scmp.eq.s32.totalorder %s10, 0
    %p103 = por %p101, %p102
    %p104 = scmp.ne.s32.totalorder %s93, %s96
    %p105 = scmp.eq.s32.totalorder %s15, 1
    %p106 = por %p104, %p105
    %p107 = scmp.ne.s32.totalorder %s96, %s97
    %p108 = scmp.eq.s32.totalorder %s15, 0
    %p109 = por %p107, %p108
    %p110 = scmp.ne.s32.totalorder %s96, %s97
    %p111 = scmp.eq.s32.totalorder %s16, 1
    %p112 = por %p110, %p111
    %p114 = scmp.ne.s32.totalorder %s97, %s113
    %p115 = scmp.eq.s32.totalorder %s16, 0
    %p116 = por %p114, %p115
    %p117 = scmp.le.s32.totalorder 1, %s10
    %p118 = scmp.lt.s32.totalorder %s10, 3
    %p119 = pnand %p117, %p118
    %p120 = pneg %p119
    // Predicated region
    $region9: #{tpu_custom_call.1} parent=5 // pred_check
      _
    $region10: #{tpu_custom_call.1} parent=5 // pred_check_branch
      %122 = sbr.rel (%p119) target = $region12
    $region11: #{tpu_custom_call.1} parent=5 // pred_region
      %s123 = ssub.s32 %s10, 1
      // Predicated region
      $region13: #{tpu_custom_call.1} parent=11 // pred_check
        %p124 = pneg %p57
      $region14: #{tpu_custom_call.1} parent=11 // pred_check_branch
        %126 = sbr.rel (%p124) target = $region16
      $region15: #{tpu_custom_call.1} parent=11 // pred_region
        _
      $region16: #{tpu_custom_call.1} parent=11 // pred_fallthru
        _
    $region12: #{tpu_custom_call.1} parent=5 // pred_fallthru
      _
    %p127 = scmp.lt.s32.totalorder %s10, 2
    // Predicated region
    $region17: #{tpu_custom_call.1} parent=5 // pred_check
      %p128 = pneg %p127
    $region18: #{tpu_custom_call.1} parent=5 // pred_check_branch
      %130 = sbr.rel (%p128) target = $region20
    $region19: #{tpu_custom_call.1} parent=5 // pred_region
      // Predicated region
      $region21: #{tpu_custom_call.1} parent=19 // pred_check
        %p131 = pneg %p30
      $region22: #{tpu_custom_call.1} parent=19 // pred_check_branch
        %133 = sbr.rel (%p131) target = $region24
      $region23: #{tpu_custom_call.1} parent=19 // pred_region
        %p134 = scmp.lt.s32.totalorder %s10, 1
        %s135 = scalar_select %p134, %s10, 1
        %s136 = smul.addr %s135, 8
        %s137 = scalar_lea.vmem %s0, %s136
      $region24: #{tpu_custom_call.1} parent=19 // pred_fallthru
        _
    $region20: #{tpu_custom_call.1} parent=5 // pred_fallthru
      _
    %p138 = scmp.le.s32.totalorder 1, %s10
    %p139 = scmp.lt.s32.totalorder %s10, 3
    %p140 = pnand %p138, %p139
    %p141 = pneg %p140
    // Predicated region
    $region25: #{tpu_custom_call.1} parent=5 // pred_check
      _
    $region26: #{tpu_custom_call.1} parent=5 // pred_check_branch
      %143 = sbr.rel (%p140) target = $region28
    $region27: #{tpu_custom_call.1} parent=5 // pred_region
      %s144 = ssub.s32 %s10, 1
      %p145 = scmp.lt.s32.totalorder %s15, 1
      %s146 = scalar_select %p145, %s15, 1
      %s147 = smul.addr %s146, 8
      %s148 = scalar_lea.vmem %s0, %s147
      %p149 = pneg %p36
      %p150 = pneg %p33
      %p151 = pneg %p57
      %p152 = pneg %p54
      %p153 = pneg %p83
      %p154 = pneg %p80
      %p155 = scmp.lt.s32.totalorder %s15, 1
      %s156 = scalar_select %p155, %s15, 1
      %s157 = smul.addr %s156, 8
      %s158 = scalar_lea.vmem %s2, %s157
      %p159 = pneg %p109
      %p160 = pneg %p106
      %p161 = scmp.lt.s32.totalorder %s15, 1
      %s162 = scalar_select %p161, %s15, 1
      %s163 = smul.addr %s162, 8
      %s164 = scalar_lea.vmem %s3, %s163
      %p165 = scmp.lt.s32.totalorder %s15, 1
      %s166 = scalar_select %p165, %s15, 1
      %s167 = smul.addr %s166, 8
      %s168 = scalar_lea.vmem %s0, %s167
      %p169 = scmp.lt.s32.totalorder %s15, 1
      %s170 = scalar_select %p169, %s15, 1
      %s171 = smul.addr %s170, 8
      %s172 = scalar_lea.vmem %s2, %s171
      %p173 = scmp.lt.s32.totalorder %s15, 1
      %s174 = scalar_select %p173, %s15, 1
      %s175 = smul.addr %s174, 8
      %s176 = scalar_lea.vmem %s3, %s175
      %v177 = vld [vmem:[%s168] sm:$0xff]
      %v178 = vld [vmem:[%s1] sm:$0x1]
      %180 = vset.pattern.permute.xlu0 0
      %181 = vperm.xlu0 %180, %v177
      %v182 = vpop.permute.xlu0 %181
      %v185 = vlaneseq
      %v186 = vshrl.u32 %v185, 7
      %v187 = vsub.s32 0, %v186
      %v188 = vrot.slane %v178, %v187
      %v190 = vmul.f32 %v182, %v188
      %v191 = vand.u32 2147483647, %v190
      %vm192 = vcmp.le.f32.partialorder %v191, 0.7853982
      %vm193 = vcmp.lt.s32.totalorder %v190, 0
      %v194 = vand.u32 %v190, 2139095040
      %v195 = vshrl.u32 %v194, 23
      %v196 = vsub.s32 %v195, 127
      %v197 = vand.u32 2147483647, %v190
      %v198 = vand.u32 %v197, 8388607
      %v199 = vor.u32 %v198, 8388608
      %v200 = vsub.s32 0, %v199
      %v201 = vadd.s32 %v196, 1
      %vm202 = vcmp.gt.s32.totalorder %v201, 0
      %v203 = vsel %vm202, %v201, 0
      %v204 = vshrl.u32 %v203, 5
      %v205 = vand.u32 %v203, 31
      %v206 = vsub.s32 32, %v205
      %v207 = vshrl.u32 683565275, %v206
      %v208 = vshll.u32 683565275, %v205
      %v209 = vshrl.u32 2475754826, %v206
      %v210 = vor.u32 %v208, %v209
      %v211 = vshll.u32 2475754826, %v205
      %v212 = vshrl.u32 2131351028, %v206
      %v213 = vor.u32 %v211, %v212
      %v214 = vshll.u32 2131351028, %v205
      %v215 = vshrl.u32 2102212464, %v206
      %v216 = vor.u32 %v214, %v215
      %v217 = vshll.u32 2102212464, %v205
      %v218 = vshrl.u32 920167782, %v206
      %v219 = vor.u32 %v217, %v218
      %v220 = vshll.u32 920167782, %v205
      %v221 = vshrl.u32 1326507024, %v206
      %v222 = vor.u32 %v220, %v221
      %vm223 = vcmp.lt.s32.totalorder %v204, 1
      %vm224 = vcmp.lt.s32.totalorder %v204, 2
      %vm225 = vcmp.lt.s32.totalorder %v204, 3
      %vm226 = vcmp.lt.s32.totalorder %v204, 4
      %v227 = vsel %vm223, %v207, %v210
      %v228 = vsel %vm226, %v216, 2102212464
      %v229 = vsel %vm225, %v213, %v228
      %v230 = vsel %vm224, %v227, %v229
      %v231 = vsel %vm223, %v210, %v213
      %v232 = vsel %vm226, %v219, 920167782
      %v233 = vsel %vm225, %v216, %v232
      %v234 = vsel %vm224, %v231, %v233
      %v235 = vsel %vm223, %v213, %v216
      %v236 = vsel %vm226, %v222, 1326507024
      %v237 = vsel %vm225, %v219, %v236
      %v238 = vsel %vm224, %v235, %v237
      %v239 = vshll.u32 %v199, 8
      %v240 = vmul.u32.u64.compose %v239, %v238
      %v241 = vextract.low.u32 %v240
      %v242 = vextract.high.u32 %v240
      %v243 = vmul.u32.u64.compose %v239, %v234
      %v244 = vextract.low.u32 %v243
      %v245 = vextract.high.u32 %v243
      %v246 = vmul.u32 %v239, %v230
      %v247 = vadd.s32 %v242, %v244
      %vm248 = vc.u32 %v242, %v244
      %v249 = vadd.s32 %v245, 1
      %v250 = vsel %vm248, %v249, %v245
      %v251 = vadd.s32 %v246, %v250
      %v252 = vadd.s32 %v251, 536870912
      %v253 = vshrl.u32 %v252, 30
      %v254 = vshll.u32 %v253, 30
      %v255 = vsub.s32 %v251, %v254
      %vm256 = vcmp.lt.s32.totalorder %v255, 0
      %v257 = vsub.s32 0, %v255
      %v258 = vsel %vm256, %v257, %v255
      %v259 = vclz %v258
      %v260 = vsub.s32 %v259, 2
      %vm261 = vcmp.gt.s32.totalorder 0, %v260
      %v262 = vsel %vm261, 0, %v260
      %v263 = vsub.s32 32, %v262
      %v264 = vshll.u32 %v255, %v262
      %v265 = vshrl.u32 %v247, %v263
      %v266 = vor.u32 %v264, %v265
      %v267 = vsub.s32 4294967266, %v262
      %v268 = vadd.s32 %v267, 127
      %v269 = vshll.u32 %v268, 23
      %v270 = vor.u32 4788187, %v269
      %v271 = vand.u32 2147483647, %v270
      %v273 = vcvt.s32.f32 %v266
      %v274 = vmul.f32 %v273, %v271
      %v275 = vxor.u32 %v274, 2147483648
      %v276 = vsel %vm193, %v275, %v274
      %v277 = vsub.s32 4, %v253
      %v278 = vsel %vm193, %v277, %v253
      %v279 = vsel %vm192, %v190, %v276
      %v280 = vsel %vm192, 0, %v278
      %v281 = vcosq.f32.pop %v279
      %v282 = vsinq.f32.pop %v279
      %vm283 = vweird.f32 %v190
      %v284 = vand.u32 %v280, 3
      %vm285 = vcmp.lt.s32.totalorder %v284, 2
      %vm286 = vcmp.eq.s32.totalorder %v284, 0
      %v287 = vxor.u32 %v282, 2147483648
      %v288 = vsel %vm286, %v281, %v287
      %vm289 = vcmp.eq.s32.totalorder %v284, 2
      %v290 = vxor.u32 %v281, 2147483648
      %v291 = vsel %vm289, %v290, %v282
      %v292 = vsel %vm285, %v288, %v291
      %v293 = vsel %vm283, nan, %v292
      %v294 = vand.u32 2147483647, %v190
      %vm295 = vcmp.le.f32.partialorder %v294, 0.7853982
      %vm296 = vcmp.lt.s32.totalorder %v190, 0
      %v297 = vand.u32 %v190, 2139095040
      %v298 = vshrl.u32 %v297, 23
      %v299 = vsub.s32 %v298, 127
      %v300 = vand.u32 2147483647, %v190
      %v301 = vand.u32 %v300, 8388607
      %v302 = vor.u32 %v301, 8388608
      %v303 = vsub.s32 0, %v302
      %v304 = vadd.s32 %v299, 1
      %vm305 = vcmp.gt.s32.totalorder %v304, 0
      %v306 = vsel %vm305, %v304, 0
      %v307 = vshrl.u32 %v306, 5
      %v308 = vand.u32 %v306, 31
      %v309 = vsub.s32 32, %v308
      %v310 = vshrl.u32 683565275, %v309
      %v311 = vshll.u32 683565275, %v308
      %v312 = vshrl.u32 2475754826, %v309
      %v313 = vor.u32 %v311, %v312
      %v314 = vshll.u32 2475754826, %v308
      %v315 = vshrl.u32 2131351028, %v309
      %v316 = vor.u32 %v314, %v315
      %v317 = vshll.u32 2131351028, %v308
      %v318 = vshrl.u32 2102212464, %v309
      %v319 = vor.u32 %v317, %v318
      %v320 = vshll.u32 2102212464, %v308
      %v321 = vshrl.u32 920167782, %v309
      %v322 = vor.u32 %v320, %v321
      %v323 = vshll.u32 920167782, %v308
      %v324 = vshrl.u32 1326507024, %v309
      %v325 = vor.u32 %v323, %v324
      %vm326 = vcmp.lt.s32.totalorder %v307, 1
      %vm327 = vcmp.lt.s32.totalorder %v307, 2
      %vm328 = vcmp.lt.s32.totalorder %v307, 3
      %vm329 = vcmp.lt.s32.totalorder %v307, 4
      %v330 = vsel %vm326, %v310, %v313
      %v331 = vsel %vm329, %v319, 2102212464
      %v332 = vsel %vm328, %v316, %v331
      %v333 = vsel %vm327, %v330, %v332
      %v334 = vsel %vm326, %v313, %v316
      %v335 = vsel %vm329, %v322, 920167782
      %v336 = vsel %vm328, %v319, %v335
      %v337 = vsel %vm327, %v334, %v336
      %v338 = vsel %vm326, %v316, %v319
      %v339 = vsel %vm329, %v325, 1326507024
      %v340 = vsel %vm328, %v322, %v339
      %v341 = vsel %vm327, %v338, %v340
      %v342 = vshll.u32 %v302, 8
      %v343 = vmul.u32.u64.compose %v342, %v341
      %v344 = vextract.low.u32 %v343
      %v345 = vextract.high.u32 %v343
      %v346 = vmul.u32.u64.compose %v342, %v337
      %v347 = vextract.low.u32 %v346
      %v348 = vextract.high.u32 %v346
      %v349 = vmul.u32 %v342, %v333
      %v350 = vadd.s32 %v345, %v347
      %vm351 = vc.u32 %v345, %v347
      %v352 = vadd.s32 %v348, 1
      %v353 = vsel %vm351, %v352, %v348
      %v354 = vadd.s32 %v349, %v353
      %v355 = vadd.s32 %v354, 536870912
      %v356 = vshrl.u32 %v355, 30
      %v357 = vshll.u32 %v356, 30
      %v358 = vsub.s32 %v354, %v357
      %vm359 = vcmp.lt.s32.totalorder %v358, 0
      %v360 = vsub.s32 0, %v358
      %v361 = vsel %vm359, %v360, %v358
      %v362 = vclz %v361
      %v363 = vsub.s32 %v362, 2
      %vm364 = vcmp.gt.s32.totalorder 0, %v363
      %v365 = vsel %vm364, 0, %v363
      %v366 = vsub.s32 32, %v365
      %v367 = vshll.u32 %v358, %v365
      %v368 = vshrl.u32 %v350, %v366
      %v369 = vor.u32 %v367, %v368
      %v370 = vsub.s32 4294967266, %v365
      %v371 = vadd.s32 %v370, 127
      %v372 = vshll.u32 %v371, 23
      %v373 = vor.u32 4788187, %v372
      %v374 = vand.u32 2147483647, %v373
      %v376 = vcvt.s32.f32 %v369
      %v377 = vmul.f32 %v376, %v374
      %v378 = vxor.u32 %v377, 2147483648
      %v379 = vsel %vm296, %v378, %v377
      %v380 = vsub.s32 4, %v356
      %v381 = vsel %vm296, %v380, %v356
      %v382 = vsel %vm295, %v190, %v379
      %v383 = vsel %vm295, 0, %v381
      %v384 = vcosq.f32.pop %v382
      %v385 = vsinq.f32.pop %v382
      %vm386 = vweird.f32 %v190
      %v387 = vadd.s32 %v383, 3
      %v388 = vand.u32 %v387, 3
      %vm389 = vcmp.lt.s32.totalorder %v388, 2
      %vm390 = vcmp.eq.s32.totalorder %v388, 0
      %v391 = vxor.u32 %v385, 2147483648
      %v392 = vsel %vm390, %v384, %v391
      %vm393 = vcmp.eq.s32.totalorder %v388, 2
      %v394 = vxor.u32 %v384, 2147483648
      %v395 = vsel %vm393, %v394, %v385
      %v396 = vsel %vm389, %v392, %v395
      %v397 = vsel %vm386, nan, %v396
      %vm398 = vcmask 64512
      %399 = vst.msk [vmem:[%s172] sm:$0xff] %vm398, %v293
      %400 = vst.msk [vmem:[%s176] sm:$0xff] %vm398, %v397
      %p401 = scmp.lt.s32.totalorder %s15, 1
      %s402 = scalar_select %p401, %s15, 1
      %s403 = smul.addr %s402, 8
      %s404 = scalar_lea.vmem %s2, %s403
      %p405 = scmp.lt.s32.totalorder %s15, 1
      %s406 = scalar_select %p405, %s15, 1
      %s407 = smul.addr %s406, 8
      %s408 = scalar_lea.vmem %s3, %s407
      // Predicated region
      $region29: #{tpu_custom_call.1} parent=27 // pred_check
        %p409 = pneg %p80
      $region30: #{tpu_custom_call.1} parent=27 // pred_check_branch
        %411 = sbr.rel (%p409) target = $region32
      $region31: #{tpu_custom_call.1} parent=27 // pred_region
        _
      $region32: #{tpu_custom_call.1} parent=27 // pred_fallthru
        _
      // Predicated region
      $region33: #{tpu_custom_call.1} parent=27 // pred_check
        %p412 = pneg %p106
      $region34: #{tpu_custom_call.1} parent=27 // pred_check_branch
        %414 = sbr.rel (%p412) target = $region36
      $region35: #{tpu_custom_call.1} parent=27 // pred_region
        _
      $region36: #{tpu_custom_call.1} parent=27 // pred_fallthru
        _
    $region28: #{tpu_custom_call.1} parent=5 // pred_fallthru
      _
    %p415 = scmp.le.s32.totalorder 2, %s10
    // Predicated region
    $region37: #{tpu_custom_call.1} parent=5 // pred_check
      %p416 = pneg %p415
    $region38: #{tpu_custom_call.1} parent=5 // pred_check_branch
      %418 = sbr.rel (%p416) target = $region40
    $region39: #{tpu_custom_call.1} parent=5 // pred_region
      %s419 = ssub.s32 %s10, 2
      // Predicated region
      $region41: #{tpu_custom_call.1} parent=39 // pred_check
        %p420 = pneg %p86
      $region42: #{tpu_custom_call.1} parent=39 // pred_check_branch
        %422 = sbr.rel (%p420) target = $region44
      $region43: #{tpu_custom_call.1} parent=39 // pred_region
        %p423 = scmp.lt.s32.totalorder %s16, 1
        %s424 = scalar_select %p423, %s16, 1
        %s425 = smul.addr %s424, 8
        %s426 = scalar_lea.vmem %s2, %s425
      $region44: #{tpu_custom_call.1} parent=39 // pred_fallthru
        _
      // Predicated region
      $region45: #{tpu_custom_call.1} parent=39 // pred_check
        %p427 = pneg %p112
      $region46: #{tpu_custom_call.1} parent=39 // pred_check_branch
        %429 = sbr.rel (%p427) target = $region48
      $region47: #{tpu_custom_call.1} parent=39 // pred_region
        %p430 = scmp.lt.s32.totalorder %s16, 1
        %s431 = scalar_select %p430, %s16, 1
        %s432 = smul.addr %s431, 8
        %s433 = scalar_lea.vmem %s3, %s432
      $region48: #{tpu_custom_call.1} parent=39 // pred_fallthru
        _
    $region40: #{tpu_custom_call.1} parent=5 // pred_fallthru
      _
  $region6: #{tpu_custom_call.1} parent=0 // loop_footer
    %s14 = sadd.s32 1, %s10
  $region7: #{tpu_custom_call.1} parent=0 // loop_footer_branch
    %9 = sbr.rel target = $region3
  $region8: #{tpu_custom_call.1} parent=0 // loop_exit
    _

</llo_original>
